<compile_context>
chip_gen: v6e
topology: v6e:2x2x1
jax: 0.10.0
libtpu: 0.0.40
codegen_flags: <defaults>
</compile_context>

<pallas_src>
import functools

import jax
import jax.numpy as jnp
from jax.experimental import pallas as pl
from jax.experimental.pallas import tpu as pltpu

IN_FEAT = 784
OUT_FEAT = 10
OUT_PAD = 128        # lane-dense padded output width (unmasked vst)


# ---------------- fused Pallas kernel ----------------

def _fused_mlp_kernel(*refs, n_layers, use_bf16):
    # refs = [x, w0, b0, w1, b1, ..., w_{L-1}, b_{L-1}, out]
    x_ref = refs[0]
    o_ref = refs[-1]
    wb = refs[1:-1]

    h = x_ref[...]                                   # (B, 784) bf16 (or f32)
    for i in range(n_layers):
        w = wb[2 * i][...]                           # (K_i, N_i)  bf16 or f32
        b = wb[2 * i + 1][...]                       # (1,  N_i)   f32
        # Layer 0's lhs already arrives in the MXU input dtype; later layers'
        # activations are f32 (accumulate + ReLU in f32) and are cast only for
        # the MXU when the weights are bf16.
        lhs = h.astype(jnp.bfloat16) if (use_bf16 and i > 0) else h
        y = jnp.dot(lhs, w, preferred_element_type=jnp.float32) + b
        h = jnp.maximum(y, 0.0) if i < n_layers - 1 else y

    # log_softmax over axis 0 (batch axis), matching F.log_softmax(..., dim=0).
    # NOTE: padded output columns (zeros) are harmless because the reduction is
    # over rows; if this ever changes to dim=-1 they must be masked to -inf.
    m = jnp.max(h, axis=0, keepdims=True)
    s = h - m
    lse = jnp.log(jnp.sum(jnp.exp(s), axis=0, keepdims=True))
    o_ref[...] = (s - lse).astype(o_ref.dtype)


# ---------------- wrappers ----------------

def _nbytes(a):
    return int(a.size) * a.dtype.itemsize


def fused_mlp_pallas(x_in, kparams):
    """x_in: (B, 784) bf16/f32.  kparams: list of (W_T, b(1,N)) as prepared."""
    B = x_in.shape[0]
    n_layers = len(kparams)
    use_bf16 = kparams[0][0].dtype == jnp.bfloat16

    inputs = [x_in]
    for w, b in kparams:
        inputs.append(w)
        inputs.append(b)

    n_out = kparams[-1][0].shape[1]

    flops = 2 * B * sum(int(w.shape[0]) * int(w.shape[1]) for w, _ in kparams)
    transcendentals = B * n_out + n_out            # exp per logit + log per column
    bytes_accessed = (_nbytes(x_in)
                      + sum(_nbytes(w) + _nbytes(b) for w, b in kparams)
                      + B * n_out * 4)

    vmem_spec = pl.BlockSpec(memory_space=pltpu.MemorySpace.VMEM)
    return pl.pallas_call(
        functools.partial(_fused_mlp_kernel, n_layers=n_layers, use_bf16=use_bf16),
        out_shape=jax.ShapeDtypeStruct((B, n_out), jnp.float32),
        in_specs=[vmem_spec] * len(inputs),
        out_specs=vmem_spec,
        cost_estimate=pl.CostEstimate(flops=flops,
                                      transcendentals=transcendentals,
                                      bytes_accessed=bytes_accessed),
    )(*inputs)


def mlp_forward(x, kernel_params):
    """Forward pass: x of any shape flattening to (-1, 784); returns (B, 10)."""
    use_bf16 = kernel_params[0][0].dtype == jnp.bfloat16
    h = x.reshape(-1, IN_FEAT)                       # glue: x.view(-1, 784)
    if use_bf16:
        h = h.astype(jnp.bfloat16)                   # halves x's HBM->VMEM DMA
    out_pad = fused_mlp_pallas(h, kernel_params)     # (B, OUT_PAD) lane-dense
    return out_pad[:, :OUT_FEAT]


# ---------------- parameters ----------------

def init_mlp_params(key, hidden, layer, in_feat=IN_FEAT, out_feat=OUT_FEAT):
    """Logical params mirroring nn.Linear: list of (W_T (in,out), b (out,))."""
    if layer == 1:
        dims = [(in_feat, out_feat)]
    else:
        dims = [(in_feat, hidden)]
        dims += [(hidden, hidden)] * (layer - 2)
        dims += [(hidden, out_feat)]
    params = []
    for fin, fout in dims:
        kw, kb, key = jax.random.split(key, 3)
        bound = 1.0 / jnp.sqrt(fin)
        w_t = jax.random.uniform(kw, (fin, fout), jnp.float32, -bound, bound)
        b = jax.random.uniform(kb, (fout,), jnp.float32, -bound, bound)
        params.append((w_t, b))
    return params


def prepare_kernel_params(params, *, use_bf16=True):
    """Pad last-layer N (10->128) for a lane-dense output store; bf16 weights
    by default (f32 biases).  No K padding and no hidden-dim padding."""
    kparams = []
    n = len(params)
    for i, (w_t, b) in enumerate(params):
        w = w_t
        bb = b
        if i == n - 1:
            w = jnp.pad(w, ((0, 0), (0, OUT_PAD - w.shape[1])))
            bb = jnp.pad(bb, (0, OUT_PAD - bb.shape[0]))
        if use_bf16:
            w = w.astype(jnp.bfloat16)
        # TODO(synk): on v7x the MXU also takes fp8 weights natively; store
        # fp8 there (another ~2x on weight DMA) if accuracy budget allows.
        kparams.append((w, bb.reshape(1, -1).astype(jnp.float32)))
    return kparams


# ---------------- pure-JAX reference ----------------

def mlp_reference(x, params):
    h = x.reshape(-1, IN_FEAT)
    n = len(params)
    for i, (w_t, b) in enumerate(params):
        h = h @ w_t + b
        if i != n - 1:
            h = jnp.maximum(h, 0.0)
    return jax.nn.log_softmax(h, axis=0)


if __name__ == "__main__":
    key = jax.random.PRNGKey(0)
    kx, kp = jax.random.split(key)

    # MNIST-style input: (batch=8, 1, 28, 28) -> view(-1, 784)
    x = jax.random.normal(kx, (8, 1, 28, 28), dtype=jnp.float32)

    hidden, layer = 32, 3
    params = init_mlp_params(kp, hidden, layer)
    ref = mlp_reference(x, params)

    # Default path: bf16 weights + bf16 MXU inputs, f32 accumulation/elementwise.
    out_bf16 = jax.block_until_ready(
        mlp_forward(x, prepare_kernel_params(params)))
    assert out_bf16.shape == (8, 10)
    assert jnp.allclose(out_bf16, ref, atol=5e-2, rtol=5e-2), "bf16 mismatch vs reference"

    # f32 path: exact semantics check.
    out_f32 = jax.block_until_ready(
        mlp_forward(x, prepare_kernel_params(params, use_bf16=False)))
    assert out_f32.shape == (8, 10)
    assert jnp.allclose(out_f32, ref, atol=1e-4, rtol=1e-4), "f32 mismatch vs reference"

    print("KERNEL_OK")
</pallas_src>

<mosaic_0001>
module attributes {stable_mosaic.version = 11 : i64} {
  func.func @_fused_mlp_kernel(%arg0: memref<8x784xbf16, #tpu.memory_space<vmem>>, %arg1: memref<784x32xbf16, #tpu.memory_space<vmem>>, %arg2: memref<1x32xf32, #tpu.memory_space<vmem>>, %arg3: memref<32x32xbf16, #tpu.memory_space<vmem>>, %arg4: memref<1x32xf32, #tpu.memory_space<vmem>>, %arg5: memref<32x128xbf16, #tpu.memory_space<vmem>>, %arg6: memref<1x128xf32, #tpu.memory_space<vmem>>, %arg7: memref<8x128xf32, #tpu.memory_space<vmem>>) attributes {dimension_semantics = [], scalar_prefetch = 0 : i64, scratch_operands = 0 : i64, tpu.core_type = #tpu.core_type<tc>} {
    %c0 = arith.constant 0 : index
    %c0_0 = arith.constant 0 : index
    %0 = vector.load %arg0[%c0, %c0_0] : memref<8x784xbf16, #tpu.memory_space<vmem>>, vector<8x784xbf16>
    %c0_1 = arith.constant 0 : index
    %c0_2 = arith.constant 0 : index
    %1 = vector.load %arg1[%c0_1, %c0_2] : memref<784x32xbf16, #tpu.memory_space<vmem>>, vector<784x32xbf16>
    %c0_3 = arith.constant 0 : index
    %c0_4 = arith.constant 0 : index
    %2 = vector.load %arg2[%c0_3, %c0_4] : memref<1x32xf32, #tpu.memory_space<vmem>>, vector<1x32xf32>
    %cst = arith.constant dense<0.000000e+00> : vector<8x32xf32>
    %3 = tpu.matmul %0, %1, %cst {dimension_numbers = #tpu.dot_dimension_numbers<[1], [0], [0], [1], [0, 0, 1, 1], [], []>} : vector<8x784xbf16>, vector<784x32xbf16>, vector<8x32xf32> -> vector<8x32xf32>
    %4 = vector.broadcast %2 : vector<1x32xf32> to vector<8x32xf32>
    %5 = arith.addf %3, %4 : vector<8x32xf32>
    %cst_5 = arith.constant 0.000000e+00 : f32
    %6 = vector.broadcast %cst_5 : f32 to vector<8x32xf32>
    %7 = arith.maximumf %5, %6 : vector<8x32xf32>
    %c0_6 = arith.constant 0 : index
    %c0_7 = arith.constant 0 : index
    %8 = vector.load %arg3[%c0_6, %c0_7] : memref<32x32xbf16, #tpu.memory_space<vmem>>, vector<32x32xbf16>
    %c0_8 = arith.constant 0 : index
    %c0_9 = arith.constant 0 : index
    %9 = vector.load %arg4[%c0_8, %c0_9] : memref<1x32xf32, #tpu.memory_space<vmem>>, vector<1x32xf32>
    %10 = arith.truncf %7 : vector<8x32xf32> to vector<8x32xbf16>
    %cst_10 = arith.constant dense<0.000000e+00> : vector<8x32xf32>
    %11 = tpu.matmul %10, %8, %cst_10 {dimension_numbers = #tpu.dot_dimension_numbers<[1], [0], [0], [1], [0, 0, 1, 1], [], []>} : vector<8x32xbf16>, vector<32x32xbf16>, vector<8x32xf32> -> vector<8x32xf32>
    %12 = vector.broadcast %9 : vector<1x32xf32> to vector<8x32xf32>
    %13 = arith.addf %11, %12 : vector<8x32xf32>
    %cst_11 = arith.constant 0.000000e+00 : f32
    %14 = vector.broadcast %cst_11 : f32 to vector<8x32xf32>
    %15 = arith.maximumf %13, %14 : vector<8x32xf32>
    %c0_12 = arith.constant 0 : index
    %c0_13 = arith.constant 0 : index
    %16 = vector.load %arg5[%c0_12, %c0_13] : memref<32x128xbf16, #tpu.memory_space<vmem>>, vector<32x128xbf16>
    %c0_14 = arith.constant 0 : index
    %c0_15 = arith.constant 0 : index
    %17 = vector.load %arg6[%c0_14, %c0_15] : memref<1x128xf32, #tpu.memory_space<vmem>>, vector<1x128xf32>
    %18 = arith.truncf %15 : vector<8x32xf32> to vector<8x32xbf16>
    %cst_16 = arith.constant dense<0.000000e+00> : vector<8x128xf32>
    %19 = tpu.matmul %18, %16, %cst_16 {dimension_numbers = #tpu.dot_dimension_numbers<[1], [0], [0], [1], [0, 0, 1, 1], [], []>} : vector<8x32xbf16>, vector<32x128xbf16>, vector<8x128xf32> -> vector<8x128xf32>
    %20 = vector.broadcast %17 : vector<1x128xf32> to vector<8x128xf32>
    %21 = arith.addf %19, %20 : vector<8x128xf32>
    %cst_17 = arith.constant dense<0xFF800000> : vector<128xf32>
    %22 = vector.multi_reduction <maximumf>, %21, %cst_17 [0] : vector<8x128xf32> to vector<128xf32>
    %23 = vector.shape_cast %22 : vector<128xf32> to vector<1x128xf32>
    %24 = vector.broadcast %23 : vector<1x128xf32> to vector<8x128xf32>
    %25 = arith.subf %21, %24 : vector<8x128xf32>
    %26 = math.exp %25 : vector<8x128xf32>
    %cst_18 = arith.constant dense<0.000000e+00> : vector<128xf32>
    %27 = vector.multi_reduction <add>, %26, %cst_18 [0] : vector<8x128xf32> to vector<128xf32>
    %28 = vector.shape_cast %27 : vector<128xf32> to vector<1x128xf32>
    %29 = math.log %28 : vector<1x128xf32>
    %30 = vector.broadcast %29 : vector<1x128xf32> to vector<8x128xf32>
    %31 = arith.subf %25, %30 : vector<8x128xf32>
    %c0_19 = arith.constant 0 : index
    %c0_20 = arith.constant 0 : index
    %32 = vector.load %arg7[%c0_19, %c0_20] : memref<8x128xf32, #tpu.memory_space<vmem>>, vector<8x128xf32>
    tpu.vector_store %arg7[%c0_19, %c0_20], %31 {strides = array<i32>} : memref<8x128xf32, #tpu.memory_space<vmem>>, vector<8x128xf32>,
    return
  }
}

</mosaic_0001>

<llo_original>
// kernel: tpu_custom_call.1
$region0: #{tpu_custom_call.1}
  #allocation0 [shape = 'u32[]', space=smem, size = 0x4, offset = 0x4, fixed_abs, tag = 'smem constant byte address 0x4 - core index']
  #allocation1 [shape = 'u32[144,128]{1,0:T(1,128)}', space=vmem, size = 0x12000, scoped, tag = 'internal scratch']
  %s0 = inlined_call_operand.vmem [shape: bf16[8,784], index: 0, kind: input, shape index: {}]
  %s1 = inlined_call_operand.vmem [shape: bf16[784,32], index: 1, kind: input, shape index: {}]
  %s2 = inlined_call_operand.vmem [shape: f32[1,32], index: 2, kind: input, shape index: {}]
  %s3 = inlined_call_operand.vmem [shape: bf16[32,32], index: 3, kind: input, shape index: {}]
  %s4 = inlined_call_operand.vmem [shape: f32[1,32], index: 4, kind: input, shape index: {}]
  %s5 = inlined_call_operand.vmem [shape: bf16[32,128], index: 5, kind: input, shape index: {}]
  %s6 = inlined_call_operand.vmem [shape: f32[1,128], index: 6, kind: input, shape index: {}]
  %s7 = inlined_call_operand.hbm [shape: f32[8,128], index: 7, kind: output, shape index: {}]
  %s8 = sld [smem:[#allocation0]]
  $region38: #{tpu_custom_call.1} parent=0
    _
  %s10 = ssub.s32 1, %s8
  %s11 = scalar_select 0, %s10, %s8
  $region1: #{tpu_custom_call.1} parent=0
    #allocation2 [shape = 'u8[4096]{0}', space=vmem, size = 0x1000, scoped, tag = 'output window, operand 0, single buffered']
    #allocation3 [shape = 's32[1]{0}', space=sflag, size = 0x4, scoped, tag = 'scoped memory for tpu_custom_call.1']
    %12 = vsyncpa [#allocation3], 0
    // Predicated region
    $region2: #{tpu_custom_call.1} parent=1 // pred_check
      _
    $region3: #{tpu_custom_call.1} parent=1 // pred_check_branch
      %14 = sbr.rel (0) target = $region5
    $region4: #{tpu_custom_call.1} parent=1 // pred_region
      _
    $region5: #{tpu_custom_call.1} parent=1 // pred_fallthru
      _
    // Predicated region
    $region6: #{tpu_custom_call.1} parent=1 // pred_check
      _
    $region7: #{tpu_custom_call.1} parent=1 // pred_check_branch
      %16 = sbr.rel (0) target = $region9
    $region8: #{tpu_custom_call.1} parent=1 // pred_region
      _
    $region9: #{tpu_custom_call.1} parent=1 // pred_fallthru
      _
    // Predicated region
    $region10: #{tpu_custom_call.1} parent=1 // pred_check
      _
    $region11: #{tpu_custom_call.1} parent=1 // pred_check_branch
      %18 = sbr.rel (0) target = $region13
    $region12: #{tpu_custom_call.1} parent=1 // pred_region
      _
    $region13: #{tpu_custom_call.1} parent=1 // pred_fallthru
      _
    // Predicated region
    $region14: #{tpu_custom_call.1} parent=1 // pred_check
      _
    $region15: #{tpu_custom_call.1} parent=1 // pred_check_branch
      %20 = sbr.rel (0) target = $region17
    $region16: #{tpu_custom_call.1} parent=1 // pred_region
      _
    $region17: #{tpu_custom_call.1} parent=1 // pred_fallthru
      _
    // Predicated region
    $region18: #{tpu_custom_call.1} parent=1 // pred_check
      _
    $region19: #{tpu_custom_call.1} parent=1 // pred_check_branch
      %22 = sbr.rel (0) target = $region21
    $region20: #{tpu_custom_call.1} parent=1 // pred_region
      _
    $region21: #{tpu_custom_call.1} parent=1 // pred_fallthru
      _
    // Predicated region
    $region22: #{tpu_custom_call.1} parent=1 // pred_check
      _
    $region23: #{tpu_custom_call.1} parent=1 // pred_check_branch
      %24 = sbr.rel (0) target = $region25
    $region24: #{tpu_custom_call.1} parent=1 // pred_region
      _
    $region25: #{tpu_custom_call.1} parent=1 // pred_fallthru
      _
    // Predicated region
    $region26: #{tpu_custom_call.1} parent=1 // pred_check
      _
    $region27: #{tpu_custom_call.1} parent=1 // pred_check_branch
      %26 = sbr.rel (0) target = $region29
    $region28: #{tpu_custom_call.1} parent=1 // pred_region
      _
    $region29: #{tpu_custom_call.1} parent=1 // pred_fallthru
      _
    %v28 = vld [vmem:[%s0] sm:$0xff]
    %v29 = vld [vmem:[%s0 + $0x8] sm:$0xff]
    %v30 = vld [vmem:[%s0 + $0x10] sm:$0xff]
    %v31 = vld [vmem:[%s0 + $0x18] sm:$0xf]
    %v32 = vld [vmem:[%s1] sm:$0xf]
    %v33 = vld [vmem:[%s1 + $0x4] sm:$0xf]
    %v34 = vld [vmem:[%s1 + $0x8] sm:$0xf]
    %v35 = vld [vmem:[%s1 + $0xc] sm:$0xf]
    %v36 = vld [vmem:[%s1 + $0x10] sm:$0xf]
    %v37 = vld [vmem:[%s1 + $0x14] sm:$0xf]
    %v38 = vld [vmem:[%s1 + $0x18] sm:$0xf]
    %v39 = vld [vmem:[%s1 + $0x1c] sm:$0xf]
    %v40 = vld [vmem:[%s1 + $0x20] sm:$0xf]
    %v41 = vld [vmem:[%s1 + $0x24] sm:$0xf]
    %v42 = vld [vmem:[%s1 + $0x28] sm:$0xf]
    %v43 = vld [vmem:[%s1 + $0x2c] sm:$0xf]
    %v44 = vld [vmem:[%s1 + $0x30] sm:$0xf]
    %v45 = vld [vmem:[%s1 + $0x34] sm:$0xf]
    %v46 = vld [vmem:[%s1 + $0x38] sm:$0xf]
    %v47 = vld [vmem:[%s1 + $0x3c] sm:$0xf]
    %v48 = vld [vmem:[%s1 + $0x40] sm:$0xf]
    %v49 = vld [vmem:[%s1 + $0x44] sm:$0xf]
    %v50 = vld [vmem:[%s1 + $0x48] sm:$0xf]
    %v51 = vld [vmem:[%s1 + $0x4c] sm:$0xf]
    %v52 = vld [vmem:[%s1 + $0x50] sm:$0xf]
    %v53 = vld [vmem:[%s1 + $0x54] sm:$0xf]
    %v54 = vld [vmem:[%s1 + $0x58] sm:$0xf]
    %v55 = vld [vmem:[%s1 + $0x5c] sm:$0xf]
    %v56 = vld [vmem:[%s1 + $0x60] sm:$0xf]
    %v57 = vld [vmem:[%s1 + $0x64] sm:$0xf]
    %v58 = vld [vmem:[%s1 + $0x68] sm:$0xf]
    %v59 = vld [vmem:[%s1 + $0x6c] sm:$0xf]
    %v60 = vld [vmem:[%s1 + $0x70] sm:$0xf]
    %v61 = vld [vmem:[%s1 + $0x74] sm:$0xf]
    %v62 = vld [vmem:[%s1 + $0x78] sm:$0xf]
    %v63 = vld [vmem:[%s1 + $0x7c] sm:$0xf]
    %v64 = vld [vmem:[%s1 + $0x80] sm:$0xf]
    %v65 = vld [vmem:[%s1 + $0x84] sm:$0xf]
    %v66 = vld [vmem:[%s1 + $0x88] sm:$0xf]
    %v67 = vld [vmem:[%s1 + $0x8c] sm:$0xf]
    %v68 = vld [vmem:[%s1 + $0x90] sm:$0xf]
    %v69 = vld [vmem:[%s1 + $0x94] sm:$0xf]
    %v70 = vld [vmem:[%s1 + $0x98] sm:$0xf]
    %v71 = vld [vmem:[%s1 + $0x9c] sm:$0xf]
    %v72 = vld [vmem:[%s1 + $0xa0] sm:$0xf]
    %v73 = vld [vmem:[%s1 + $0xa4] sm:$0xf]
    %v74 = vld [vmem:[%s1 + $0xa8] sm:$0xf]
    %v75 = vld [vmem:[%s1 + $0xac] sm:$0xf]
    %v76 = vld [vmem:[%s1 + $0xb0] sm:$0xf]
    %v77 = vld [vmem:[%s1 + $0xb4] sm:$0xf]
    %v78 = vld [vmem:[%s1 + $0xb8] sm:$0xf]
    %v79 = vld [vmem:[%s1 + $0xbc] sm:$0xf]
    %v80 = vld [vmem:[%s1 + $0xc0] sm:$0xf]
    %v81 = vld [vmem:[%s1 + $0xc4] sm:$0xf]
    %v82 = vld [vmem:[%s1 + $0xc8] sm:$0xf]
    %v83 = vld [vmem:[%s1 + $0xcc] sm:$0xf]
    %v84 = vld [vmem:[%s1 + $0xd0] sm:$0xf]
    %v85 = vld [vmem:[%s1 + $0xd4] sm:$0xf]
    %v86 = vld [vmem:[%s1 + $0xd8] sm:$0xf]
    %v87 = vld [vmem:[%s1 + $0xdc] sm:$0xf]
    %v88 = vld [vmem:[%s1 + $0xe0] sm:$0xf]
    %v89 = vld [vmem:[%s1 + $0xe4] sm:$0xf]
    %v90 = vld [vmem:[%s1 + $0xe8] sm:$0xf]
    %v91 = vld [vmem:[%s1 + $0xec] sm:$0xf]
    %v92 = vld [vmem:[%s1 + $0xf0] sm:$0xf]
    %v93 = vld [vmem:[%s1 + $0xf4] sm:$0xf]
    %v94 = vld [vmem:[%s1 + $0xf8] sm:$0xf]
    %v95 = vld [vmem:[%s1 + $0xfc] sm:$0xf]
    %v96 = vld [vmem:[%s1 + $0x100] sm:$0xf]
    %v97 = vld [vmem:[%s1 + $0x104] sm:$0xf]
    %v98 = vld [vmem:[%s1 + $0x108] sm:$0xf]
    %v99 = vld [vmem:[%s1 + $0x10c] sm:$0xf]
    %v100 = vld [vmem:[%s1 + $0x110] sm:$0xf]
    %v101 = vld [vmem:[%s1 + $0x114] sm:$0xf]
    %v102 = vld [vmem:[%s1 + $0x118] sm:$0xf]
    %v103 = vld [vmem:[%s1 + $0x11c] sm:$0xf]
    %v104 = vld [vmem:[%s1 + $0x120] sm:$0xf]
    %v105 = vld [vmem:[%s1 + $0x124] sm:$0xf]
    %v106 = vld [vmem:[%s1 + $0x128] sm:$0xf]
    %v107 = vld [vmem:[%s1 + $0x12c] sm:$0xf]
    %v108 = vld [vmem:[%s1 + $0x130] sm:$0xf]
    %v109 = vld [vmem:[%s1 + $0x134] sm:$0xf]
    %v110 = vld [vmem:[%s1 + $0x138] sm:$0xf]
    %v111 = vld [vmem:[%s1 + $0x13c] sm:$0xf]
    %v112 = vld [vmem:[%s1 + $0x140] sm:$0xf]
    %v113 = vld [vmem:[%s1 + $0x144] sm:$0xf]
    %v114 = vld [vmem:[%s1 + $0x148] sm:$0xf]
    %v115 = vld [vmem:[%s1 + $0x14c] sm:$0xf]
    %v116 = vld [vmem:[%s1 + $0x150] sm:$0xf]
    %v117 = vld [vmem:[%s1 + $0x154] sm:$0xf]
    %v118 = vld [vmem:[%s1 + $0x158] sm:$0xf]
    %v119 = vld [vmem:[%s1 + $0x15c] sm:$0xf]
    %v120 = vld [vmem:[%s1 + $0x160] sm:$0xf]
    %v121 = vld [vmem:[%s1 + $0x164] sm:$0xf]
    %v122 = vld [vmem:[%s1 + $0x168] sm:$0xf]
    %v123 = vld [vmem:[%s1 + $0x16c] sm:$0xf]
    %v124 = vld [vmem:[%s1 + $0x170] sm:$0xf]
    %v125 = vld [vmem:[%s1 + $0x174] sm:$0xf]
    %v126 = vld [vmem:[%s1 + $0x178] sm:$0xf]
    %v127 = vld [vmem:[%s1 + $0x17c] sm:$0xf]
    %v128 = vld [vmem:[%s1 + $0x180] sm:$0xf]
    %v129 = vld [vmem:[%s1 + $0x184] sm:$0xf]
    %v130 = vld [vmem:[%s2] sm:$0x1]
    %v132 = vlaneseq
    %v133 = vshrl.u32 %v132, 7
    %v134 = vsub.s32 0, %v133
    %v135 = vrot.slane %v130, %v134
    %v141 = vunpack.c.l.b16 %v28
    %v142 = vunpack.c.h.b16 %v28
    %v143 = vunpack.c.l.b16 %v29
    %v144 = vunpack.c.h.b16 %v29
    %v145 = vunpack.c.l.b16 %v30
    %v146 = vunpack.c.h.b16 %v30
    %v147 = vunpack.c.l.b16 %v31
    %v148 = vpack.c.b16 %v141, %v141
    %v149 = vpack.c.b16 %v142, %v142
    %v150 = vpack.c.b16 %v143, %v143
    %v151 = vpack.c.b16 %v144, %v144
    %v152 = vpack.c.b16 %v145, %v145
    %v153 = vpack.c.b16 %v146, %v146
    %v154 = vpack.c.b16 %v147, %v147
    %v259 = vunpack.c.l.b16 %v32
    %v260 = vunpack.c.l.b16 %v33
    %v261 = vunpack.c.l.b16 %v34
    %v262 = vunpack.c.l.b16 %v35
    %v263 = vunpack.c.l.b16 %v36
    %v264 = vunpack.c.l.b16 %v37
    %v265 = vunpack.c.l.b16 %v38
    %v266 = vunpack.c.l.b16 %v39
    %v267 = vunpack.c.l.b16 %v40
    %v268 = vunpack.c.l.b16 %v41
    %v269 = vunpack.c.l.b16 %v42
    %v270 = vunpack.c.l.b16 %v43
    %v271 = vunpack.c.l.b16 %v44
    %v272 = vunpack.c.l.b16 %v45
    %v273 = vunpack.c.l.b16 %v46
    %v274 = vunpack.c.l.b16 %v47
    %v275 = vunpack.c.l.b16 %v48
    %v276 = vunpack.c.l.b16 %v49
    %v277 = vunpack.c.l.b16 %v50
    %v278 = vunpack.c.l.b16 %v51
    %v279 = vunpack.c.l.b16 %v52
    %v280 = vunpack.c.l.b16 %v53
    %v281 = vunpack.c.l.b16 %v54
    %v282 = vunpack.c.l.b16 %v55
    %v283 = vunpack.c.l.b16 %v56
    %v284 = vunpack.c.l.b16 %v57
    %v285 = vunpack.c.l.b16 %v58
    %v286 = vunpack.c.l.b16 %v59
    %v287 = vunpack.c.l.b16 %v60
    %v288 = vunpack.c.l.b16 %v61
    %v289 = vunpack.c.l.b16 %v62
    %v290 = vunpack.c.l.b16 %v63
    %v291 = vunpack.c.l.b16 %v64
    %v292 = vunpack.c.l.b16 %v65
    %v293 = vunpack.c.l.b16 %v66
    %v294 = vunpack.c.l.b16 %v67
    %v295 = vunpack.c.l.b16 %v68
    %v296 = vunpack.c.l.b16 %v69
    %v297 = vunpack.c.l.b16 %v70
    %v298 = vunpack.c.l.b16 %v71
    %v299 = vunpack.c.l.b16 %v72
    %v300 = vunpack.c.l.b16 %v73
    %v301 = vunpack.c.l.b16 %v74
    %v302 = vunpack.c.l.b16 %v75
    %v303 = vunpack.c.l.b16 %v76
    %v304 = vunpack.c.l.b16 %v77
    %v305 = vunpack.c.l.b16 %v78
    %v306 = vunpack.c.l.b16 %v79
    %v307 = vunpack.c.l.b16 %v80
    %v308 = vunpack.c.l.b16 %v81
    %v309 = vunpack.c.l.b16 %v82
    %v310 = vunpack.c.l.b16 %v83
    %v311 = vunpack.c.l.b16 %v84
    %v312 = vunpack.c.l.b16 %v85
    %v313 = vunpack.c.l.b16 %v86
    %v314 = vunpack.c.l.b16 %v87
    %v315 = vunpack.c.l.b16 %v88
    %v316 = vunpack.c.l.b16 %v89
    %v317 = vunpack.c.l.b16 %v90
    %v318 = vunpack.c.l.b16 %v91
    %v319 = vunpack.c.l.b16 %v92
    %v320 = vunpack.c.l.b16 %v93
    %v321 = vunpack.c.l.b16 %v94
    %v322 = vunpack.c.l.b16 %v95
    %v323 = vunpack.c.l.b16 %v96
    %v324 = vunpack.c.l.b16 %v97
    %v325 = vunpack.c.l.b16 %v98
    %v326 = vunpack.c.l.b16 %v99
    %v327 = vunpack.c.l.b16 %v100
    %v328 = vunpack.c.l.b16 %v101
    %v329 = vunpack.c.l.b16 %v102
    %v330 = vunpack.c.l.b16 %v103
    %v331 = vunpack.c.l.b16 %v104
    %v332 = vunpack.c.l.b16 %v105
    %v333 = vunpack.c.l.b16 %v106
    %v334 = vunpack.c.l.b16 %v107
    %v335 = vunpack.c.l.b16 %v108
    %v336 = vunpack.c.l.b16 %v109
    %v337 = vunpack.c.l.b16 %v110
    %v338 = vunpack.c.l.b16 %v111
    %v339 = vunpack.c.l.b16 %v112
    %v340 = vunpack.c.l.b16 %v113
    %v341 = vunpack.c.l.b16 %v114
    %v342 = vunpack.c.l.b16 %v115
    %v343 = vunpack.c.l.b16 %v116
    %v344 = vunpack.c.l.b16 %v117
    %v345 = vunpack.c.l.b16 %v118
    %v346 = vunpack.c.l.b16 %v119
    %v347 = vunpack.c.l.b16 %v120
    %v348 = vunpack.c.l.b16 %v121
    %v349 = vunpack.c.l.b16 %v122
    %v350 = vunpack.c.l.b16 %v123
    %v351 = vunpack.c.l.b16 %v124
    %v352 = vunpack.c.l.b16 %v125
    %v353 = vunpack.c.l.b16 %v126
    %v354 = vunpack.c.l.b16 %v127
    %v355 = vunpack.c.l.b16 %v128
    %v356 = vunpack.c.l.b16 %v129
    %v357 = vpack.c.b16 %v260, %v259
    %v358 = vpack.c.b16 %v262, %v261
    %v359 = vpack.c.b16 %v264, %v263
    %v360 = vpack.c.b16 %v266, %v265
    %v361 = vpack.c.b16 %v268, %v267
    %v362 = vpack.c.b16 %v270, %v269
    %v363 = vpack.c.b16 %v272, %v271
    %v364 = vpack.c.b16 %v274, %v273
    %v365 = vpack.c.b16 %v276, %v275
    %v366 = vpack.c.b16 %v278, %v277
    %v367 = vpack.c.b16 %v280, %v279
    %v368 = vpack.c.b16 %v282, %v281
    %v369 = vpack.c.b16 %v284, %v283
    %v370 = vpack.c.b16 %v286, %v285
    %v371 = vpack.c.b16 %v288, %v287
    %v372 = vpack.c.b16 %v290, %v289
    %v373 = vpack.c.b16 %v292, %v291
    %v374 = vpack.c.b16 %v294, %v293
    %v375 = vpack.c.b16 %v296, %v295
    %v376 = vpack.c.b16 %v298, %v297
    %v377 = vpack.c.b16 %v300, %v299
    %v378 = vpack.c.b16 %v302, %v301
    %v379 = vpack.c.b16 %v304, %v303
    %v380 = vpack.c.b16 %v306, %v305
    %v381 = vpack.c.b16 %v308, %v307
    %v382 = vpack.c.b16 %v310, %v309
    %v383 = vpack.c.b16 %v312, %v311
    %v384 = vpack.c.b16 %v314, %v313
    %v385 = vpack.c.b16 %v316, %v315
    %v386 = vpack.c.b16 %v318, %v317
    %v387 = vpack.c.b16 %v320, %v319
    %v388 = vpack.c.b16 %v322, %v321
    %v389 = vpack.c.b16 %v324, %v323
    %v390 = vpack.c.b16 %v326, %v325
    %v391 = vpack.c.b16 %v328, %v327
    %v392 = vpack.c.b16 %v330, %v329
    %v393 = vpack.c.b16 %v332, %v331
    %v394 = vpack.c.b16 %v334, %v333
    %v395 = vpack.c.b16 %v336, %v335
    %v396 = vpack.c.b16 %v338, %v337
    %v397 = vpack.c.b16 %v340, %v339
    %v398 = vpack.c.b16 %v342, %v341
    %v399 = vpack.c.b16 %v344, %v343
    %v400 = vpack.c.b16 %v346, %v345
    %v401 = vpack.c.b16 %v348, %v347
    %v402 = vpack.c.b16 %v350, %v349
    %v403 = vpack.c.b16 %v352, %v351
    %v404 = vpack.c.b16 %v354, %v353
    %v405 = vpack.c.b16 %v356, %v355
    %vm455 = vcmask 130048
    %v457 = vsel %vm455, %v154, 0
    %459 = vmatprep.subr.bf16.mxu0 0
    %460 = vmatpush1.bf16.msra.mxu0 %v364
    %461 = vmatprep.subr.bf16.mxu0 0
    %462 = vmatpush1.bf16.msra.mxu0 %v363
    %463 = vmatprep.subr.bf16.mxu0 0
    %464 = vmatpush1.bf16.msra.mxu0 %v362
    %465 = vmatprep.subr.bf16.mxu0 0
    %466 = vmatpush1.bf16.msra.mxu0 %v361
    %467 = vmatprep.subr.bf16.mxu0 0
    %468 = vmatpush1.bf16.msra.mxu0 %v360
    %469 = vmatprep.subr.bf16.mxu0 0
    %470 = vmatpush1.bf16.msra.mxu0 %v359
    %471 = vmatprep.subr.bf16.mxu0 0
    %472 = vmatpush1.bf16.msra.mxu0 %v358
    %473 = vmatprep.subr.bf16.mxu0 0
    %474 = vmatpush1.bf16.msra.mxu0 %v357
    %475 = vmatprep.subr.bf16.mxu0 0
    %476 = vmatpush2.bf16.msra.mxu0 %v372
    %477 = vmatprep.subr.bf16.mxu0 0
    %478 = vmatpush2.bf16.msra.mxu0 %v371
    %479 = vmatprep.subr.bf16.mxu0 0
    %480 = vmatpush2.bf16.msra.mxu0 %v370
    %481 = vmatprep.subr.bf16.mxu0 0
    %482 = vmatpush2.bf16.msra.mxu0 %v369
    %483 = vmatprep.subr.bf16.mxu0 0
    %484 = vmatpush2.bf16.msra.mxu0 %v368
    %485 = vmatprep.subr.bf16.mxu0 0
    %486 = vmatpush2.bf16.msra.mxu0 %v367
    %487 = vmatprep.subr.bf16.mxu0 0
    %488 = vmatpush2.bf16.msra.mxu0 %v366
    %489 = vmatprep.subr.bf16.mxu0 0
    %490 = vmatpush2.bf16.msra.mxu0 %v365
    %491 = vmatprep.mubr.bf16.mxu0 %v149
    %492 = vmatmul.mubr.bf16.gmra.mxu0 %v148
    %v493 = vpop.f32.mrf.mxu0
    %v494 = vadd.f32 %v135, %v493
    %v495 = vpop.f32.mrf.mxu0
    %v496 = vpop.f32.mrf.mxu0
    %v497 = vpop.f32.mrf.mxu0
    %498 = vdwg.mxu0
    %499 = vmatprep.subr.bf16.mxu0 0
    %500 = vmatpush1.bf16.msra.mxu0 %v380
    %501 = vmatprep.subr.bf16.mxu0 0
    %502 = vmatpush1.bf16.msra.mxu0 %v379
    %503 = vmatprep.subr.bf16.mxu0 0
    %504 = vmatpush1.bf16.msra.mxu0 %v378
    %505 = vmatprep.subr.bf16.mxu0 0
    %506 = vmatpush1.bf16.msra.mxu0 %v377
    %507 = vmatprep.subr.bf16.mxu0 0
    %508 = vmatpush1.bf16.msra.mxu0 %v376
    %509 = vmatprep.subr.bf16.mxu0 0
    %510 = vmatpush1.bf16.msra.mxu0 %v375
    %511 = vmatprep.subr.bf16.mxu0 0
    %512 = vmatpush1.bf16.msra.mxu0 %v374
    %513 = vmatprep.subr.bf16.mxu0 0
    %514 = vmatpush1.bf16.msra.mxu0 %v373
    %515 = vmatprep.subr.bf16.mxu0 0
    %516 = vmatpush2.bf16.msra.mxu0 %v388
    %517 = vmatprep.subr.bf16.mxu0 0
    %518 = vmatpush2.bf16.msra.mxu0 %v387
    %519 = vmatprep.subr.bf16.mxu0 0
    %520 = vmatpush2.bf16.msra.mxu0 %v386
    %521 = vmatprep.subr.bf16.mxu0 0
    %522 = vmatpush2.bf16.msra.mxu0 %v385
    %523 = vmatprep.subr.bf16.mxu0 0
    %524 = vmatpush2.bf16.msra.mxu0 %v384
    %525 = vmatprep.subr.bf16.mxu0 0
    %526 = vmatpush2.bf16.msra.mxu0 %v383
    %527 = vmatprep.subr.bf16.mxu0 0
    %528 = vmatpush2.bf16.msra.mxu0 %v382
    %529 = vmatprep.subr.bf16.mxu0 0
    %530 = vmatpush2.bf16.msra.mxu0 %v381
    %531 = vmatprep.mubr.bf16.mxu0 %v151
    %532 = vmatmul.mubr.bf16.gmra.mxu0 %v150
    %v533 = vpop.f32.mrf.mxu0
    %v534 = vadd.f32 %v494, %v533
    %v535 = vpop.f32.mrf.mxu0
    %v536 = vpop.f32.mrf.mxu0
    %v537 = vpop.f32.mrf.mxu0
    %538 = vdwg.mxu0
    %539 = vmatprep.subr.bf16.mxu0 0
    %540 = vmatpush1.bf16.msra.mxu0 %v396
    %541 = vmatprep.subr.bf16.mxu0 0
    %542 = vmatpush1.bf16.msra.mxu0 %v395
    %543 = vmatprep.subr.bf16.mxu0 0
    %544 = vmatpush1.bf16.msra.mxu0 %v394
    %545 = vmatprep.subr.bf16.mxu0 0
    %546 = vmatpush1.bf16.msra.mxu0 %v393
    %547 = vmatprep.subr.bf16.mxu0 0
    %548 = vmatpush1.bf16.msra.mxu0 %v392
    %549 = vmatprep.subr.bf16.mxu0 0
    %550 = vmatpush1.bf16.msra.mxu0 %v391
    %551 = vmatprep.subr.bf16.mxu0 0
    %552 = vmatpush1.bf16.msra.mxu0 %v390
    %553 = vmatprep.subr.bf16.mxu0 0
    %554 = vmatpush1.bf16.msra.mxu0 %v389
    %555 = vmatprep.subr.bf16.mxu0 0
    %556 = vmatpush2.bf16.msra.mxu0 %v404
    %557 = vmatprep.subr.bf16.mxu0 0
    %558 = vmatpush2.bf16.msra.mxu0 %v403
    %559 = vmatprep.subr.bf16.mxu0 0
    %560 = vmatpush2.bf16.msra.mxu0 %v402
    %561 = vmatprep.subr.bf16.mxu0 0
    %562 = vmatpush2.bf16.msra.mxu0 %v401
    %563 = vmatprep.subr.bf16.mxu0 0
    %564 = vmatpush2.bf16.msra.mxu0 %v400
    %565 = vmatprep.subr.bf16.mxu0 0
    %566 = vmatpush2.bf16.msra.mxu0 %v399
    %567 = vmatprep.subr.bf16.mxu0 0
    %568 = vmatpush2.bf16.msra.mxu0 %v398
    %569 = vmatprep.subr.bf16.mxu0 0
    %570 = vmatpush2.bf16.msra.mxu0 %v397
    %571 = vmatprep.mubr.bf16.mxu0 %v153
    %572 = vmatmul.mubr.bf16.gmra.mxu0 %v152
    %v573 = vpop.f32.mrf.mxu0
    %v574 = vadd.f32 %v534, %v573
    %v575 = vpop.f32.mrf.mxu0
    %v576 = vpop.f32.mrf.mxu0
    %v577 = vpop.f32.mrf.mxu0
    %578 = vdwg.mxu0
    %579 = vmatprep.subr.bf16.mxu0 0
    %580 = vmatpush1.bf16.msra.mxu0 0
    %581 = vmatprep.subr.bf16.mxu0 0
    %582 = vmatpush1.bf16.msra.mxu0 0
    %583 = vmatprep.subr.bf16.mxu0 0
    %584 = vmatpush1.bf16.msra.mxu0 0
    %585 = vmatprep.subr.bf16.mxu0 0
    %586 = vmatpush1.bf16.msra.mxu0 0
    %587 = vmatprep.subr.bf16.mxu0 0
    %588 = vmatpush1.bf16.msra.mxu0 0
    %589 = vmatprep.subr.bf16.mxu0 0
    %590 = vmatpush1.bf16.msra.mxu0 0
    %591 = vmatprep.subr.bf16.mxu0 0
    %592 = vmatpush1.bf16.msra.mxu0 0
    %593 = vmatprep.subr.bf16.mxu0 0
    %594 = vmatpush1.bf16.msra.mxu0 %v405
    %595 = vmatprep.subr.bf16.mxu0 0
    %596 = vmatpush2.bf16.msra.mxu0 0
    %597 = vmatprep.subr.bf16.mxu0 0
    %598 = vmatpush2.bf16.msra.mxu0 0
    %599 = vmatprep.subr.bf16.mxu0 0
    %600 = vmatpush2.bf16.msra.mxu0 0
    %601 = vmatprep.subr.bf16.mxu0 0
    %602 = vmatpush2.bf16.msra.mxu0 0
    %603 = vmatprep.subr.bf16.mxu0 0
    %604 = vmatpush2.bf16.msra.mxu0 0
    %605 = vmatprep.subr.bf16.mxu0 0
    %606 = vmatpush2.bf16.msra.mxu0 0
    %607 = vmatprep.subr.bf16.mxu0 0
    %608 = vmatpush2.bf16.msra.mxu0 0
    %609 = vmatprep.subr.bf16.mxu0 0
    %610 = vmatpush2.bf16.msra.mxu0 0
    %611 = vmatprep.mubr.bf16.mxu0 0
    %612 = vmatmul.mubr.bf16.gmra.mxu0 %v457
    %v613 = vpop.f32.mrf.mxu0
    %v614 = vadd.f32 %v574, %v613
    %v615 = vpop.f32.mrf.mxu0
    %v616 = vpop.f32.mrf.mxu0
    %v617 = vpop.f32.mrf.mxu0
    %618 = vdwg.mxu0
    %v619 = vmax.f32 %v614, 0.0
    %v620 = vld [vmem:[%s3] sm:$0xf]
    %v621 = vld [vmem:[%s3 + $0x4] sm:$0xf]
    %v622 = vld [vmem:[%s3 + $0x8] sm:$0xf]
    %v623 = vld [vmem:[%s3 + $0xc] sm:$0xf]
    %v624 = vld [vmem:[%s4] sm:$0x1]
    %v625 = vpack.c.bf16 %v619, %v619
    %v627 = vlaneseq
    %v628 = vshrl.u32 %v627, 7
    %v629 = vsub.s32 0, %v628
    %v630 = vrot.slane %v624, %v629
    %v636 = vunpack.c.l.b16 %v620
    %v637 = vunpack.c.l.b16 %v621
    %v638 = vunpack.c.l.b16 %v622
    %v639 = vunpack.c.l.b16 %v623
    %v640 = vpack.c.b16 %v637, %v636
    %v641 = vpack.c.b16 %v639, %v638
    %vm644 = vcmask 261120
    %v646 = vsel %vm644, %v625, 0
    %648 = vmatprep.subr.bf16.mxu0 0
    %649 = vmatpush1.bf16.msra.mxu0 0
    %650 = vmatprep.subr.bf16.mxu0 0
    %651 = vmatpush1.bf16.msra.mxu0 0
    %652 = vmatprep.subr.bf16.mxu0 0
    %653 = vmatpush1.bf16.msra.mxu0 0
    %654 = vmatprep.subr.bf16.mxu0 0
    %655 = vmatpush1.bf16.msra.mxu0 0
    %656 = vmatprep.subr.bf16.mxu0 0
    %657 = vmatpush1.bf16.msra.mxu0 0
    %658 = vmatprep.subr.bf16.mxu0 0
    %659 = vmatpush1.bf16.msra.mxu0 0
    %660 = vmatprep.subr.bf16.mxu0 0
    %661 = vmatpush1.bf16.msra.mxu0 %v641
    %662 = vmatprep.subr.bf16.mxu0 0
    %663 = vmatpush1.bf16.msra.mxu0 %v640
    %664 = vmatprep.subr.bf16.mxu0 0
    %665 = vmatpush2.bf16.msra.mxu0 0
    %666 = vmatprep.subr.bf16.mxu0 0
    %667 = vmatpush2.bf16.msra.mxu0 0
    %668 = vmatprep.subr.bf16.mxu0 0
    %669 = vmatpush2.bf16.msra.mxu0 0
    %670 = vmatprep.subr.bf16.mxu0 0
    %671 = vmatpush2.bf16.msra.mxu0 0
    %672 = vmatprep.subr.bf16.mxu0 0
    %673 = vmatpush2.bf16.msra.mxu0 0
    %674 = vmatprep.subr.bf16.mxu0 0
    %675 = vmatpush2.bf16.msra.mxu0 0
    %676 = vmatprep.subr.bf16.mxu0 0
    %677 = vmatpush2.bf16.msra.mxu0 0
    %678 = vmatprep.subr.bf16.mxu0 0
    %679 = vmatpush2.bf16.msra.mxu0 0
    %680 = vmatprep.mubr.bf16.mxu0 0
    %681 = vmatmul.mubr.bf16.gmra.mxu0 %v646
    %v682 = vpop.f32.mrf.mxu0
    %v683 = vadd.f32 %v630, %v682
    %v684 = vpop.f32.mrf.mxu0
    %v685 = vpop.f32.mrf.mxu0
    %v686 = vpop.f32.mrf.mxu0
    %687 = vdwg.mxu0
    %v688 = vmax.f32 %v683, 0.0
    %v689 = vld [vmem:[%s5] sm:$0xf]
    %v690 = vld [vmem:[%s5 + $0x4] sm:$0xf]
    %v691 = vld [vmem:[%s5 + $0x8] sm:$0xf]
    %v692 = vld [vmem:[%s5 + $0xc] sm:$0xf]
    %v693 = vld [vmem:[%s6] sm:$0x1]
    %v694 = vpack.c.bf16 %v688, %v688
    %v696 = vlaneseq
    %v697 = vshrl.u32 %v696, 7
    %v698 = vsub.s32 0, %v697
    %v699 = vrot.slane %v693, %v698
    %v705 = vunpack.c.l.b16 %v689
    %v706 = vunpack.c.l.b16 %v690
    %v707 = vunpack.c.l.b16 %v691
    %v708 = vunpack.c.l.b16 %v692
    %v709 = vpack.c.b16 %v706, %v705
    %v710 = vpack.c.b16 %v708, %v707
    %v714 = vsel %vm644, %v694, 0
    %716 = vmatprep.subr.bf16.mxu0 0
    %717 = vmatpush1.bf16.msra.mxu0 0
    %718 = vmatprep.subr.bf16.mxu0 0
    %719 = vmatpush1.bf16.msra.mxu0 0
    %720 = vmatprep.subr.bf16.mxu0 0
    %721 = vmatpush1.bf16.msra.mxu0 0
    %722 = vmatprep.subr.bf16.mxu0 0
    %723 = vmatpush1.bf16.msra.mxu0 0
    %724 = vmatprep.subr.bf16.mxu0 0
    %725 = vmatpush1.bf16.msra.mxu0 0
    %726 = vmatprep.subr.bf16.mxu0 0
    %727 = vmatpush1.bf16.msra.mxu0 0
    %728 = vmatprep.subr.bf16.mxu0 0
    %729 = vmatpush1.bf16.msra.mxu0 %v710
    %730 = vmatprep.subr.bf16.mxu0 0
    %731 = vmatpush1.bf16.msra.mxu0 %v709
    %732 = vmatprep.subr.bf16.mxu0 0
    %733 = vmatpush2.bf16.msra.mxu0 0
    %734 = vmatprep.subr.bf16.mxu0 0
    %735 = vmatpush2.bf16.msra.mxu0 0
    %736 = vmatprep.subr.bf16.mxu0 0
    %737 = vmatpush2.bf16.msra.mxu0 0
    %738 = vmatprep.subr.bf16.mxu0 0
    %739 = vmatpush2.bf16.msra.mxu0 0
    %740 = vmatprep.subr.bf16.mxu0 0
    %741 = vmatpush2.bf16.msra.mxu0 0
    %742 = vmatprep.subr.bf16.mxu0 0
    %743 = vmatpush2.bf16.msra.mxu0 0
    %744 = vmatprep.subr.bf16.mxu0 0
    %745 = vmatpush2.bf16.msra.mxu0 0
    %746 = vmatprep.subr.bf16.mxu0 0
    %747 = vmatpush2.bf16.msra.mxu0 0
    %748 = vmatprep.mubr.bf16.mxu0 0
    %749 = vmatmul.mubr.bf16.gmra.mxu0 %v714
    %v750 = vpop.f32.mrf.mxu0
    %v751 = vadd.f32 %v699, %v750
    %v752 = vpop.f32.mrf.mxu0
    %v753 = vpop.f32.mrf.mxu0
    %v754 = vpop.f32.mrf.mxu0
    %755 = vdwg.mxu0
    %v756 = vrot.slane %v751, 4
    %v757 = vmax.f32 %v751, %v756
    %v758 = vrot.slane %v757, 2
    %v759 = vmax.f32 %v757, %v758
    %v760 = vrot.slane %v759, 1
    %v761 = vmax.f32 %v759, %v760
    %v762 = vsub.f32 %v751, %v761
    %v763 = vmul.f32 %v762, 1.442695
    %v764 = vpow.pop %v763
    %v765 = vrot.slane %v764, 4
    %v766 = vadd.f32 %v764, %v765
    %v767 = vrot.slane %v766, 2
    %v768 = vadd.f32 %v766, %v767
    %v769 = vrot.slane %v768, 1
    %v770 = vadd.f32 %v768, %v769
    %v771 = vlog2.pop %v770
    %v772 = vmul.f32 %v771, 0.6931472
    %v773 = vsub.f32 %v762, %v772
    %774 = vst [vmem:[#allocation2] sm:$0xff] %v773
    // Predicated region
    $region30: #{tpu_custom_call.1} parent=1 // pred_check
      _
    $region31: #{tpu_custom_call.1} parent=1 // pred_check_branch
      %776 = sbr.rel (0) target = $region33
    $region32: #{tpu_custom_call.1} parent=1 // pred_region
      %s778 = ssub.s32 128, 128
      %779 = vsyncadd [#allocation3], %s778
      %s781 = sshll.u32 [#allocation2], 4
      %s782 = int_to_ptr.vmem [resolvable:$true] %s781
      %784 = dma.vmem_to_hbm [thread:$0]  %s782, 128, %s7, [#allocation3]
    $region33: #{tpu_custom_call.1} parent=1 // pred_fallthru
      _
    // Predicated region
    $region34: #{tpu_custom_call.1} parent=1 // pred_check
      _
    $region35: #{tpu_custom_call.1} parent=1 // pred_check_branch
      %786 = sbr.rel (0) target = $region37
    $region36: #{tpu_custom_call.1} parent=1 // pred_region
      %787 = dma.done [#allocation3], 128
    $region37: #{tpu_custom_call.1} parent=1 // pred_fallthru
      _
    %788 = vsyncpa [#allocation3], 1

</llo_original>
